<compile_context>
chip_gen: v7x
topology: tpu7x:2x2x1
jax: 0.10.0
libtpu: 0.0.40
codegen_flags: <defaults>
</compile_context>

<pallas_src>
import jax
import jax.numpy as jnp
from jax.experimental import pallas as pl
from jax.experimental.pallas import tpu as pltpu

_EPS = 1e-5
_LANE = 128  # TPU lane width

_VMEM = pl.BlockSpec(memory_space=pltpu.MemorySpace.VMEM)


def _round_up(n, m):
    return ((n + m - 1) // m) * m


# ----------------------------------------------------------------------------- kernel ---
def _make_fused_mlp_kernel(num_hidden):
    """refs = [x, (w, b, gamma, beta) * num_hidden, w_last, b_last, out]."""

    def kernel(*refs):
        x_ref = refs[0]
        o_ref = refs[-1]
        batch = x_ref.shape[0]
        inv_b = 1.0 / float(batch)

        h = x_ref[...]                                    # (B, in_f) f32
        idx = 1
        for _ in range(num_hidden):
            w_ref, b_ref, g_ref, beta_ref = refs[idx:idx + 4]
            idx += 4

            # Linear (MXU, bf16 operands, f32 accumulate) + bias + ReLU
            y = jnp.dot(h.astype(w_ref.dtype), w_ref[...],
                        preferred_element_type=jnp.float32) + b_ref[...]
            y = jnp.maximum(y, 0.0)

            # BatchNorm1d (training mode), one-pass stats, f32 throughout.
            s = jnp.sum(y, axis=0, keepdims=True)         # XLU cross-sublane reduce
            sq = jnp.sum(y * y, axis=0, keepdims=True)
            mean = s * inv_b
            var = jnp.maximum(sq * inv_b - mean * mean, 0.0)   # clamp cancellation error
            scale = g_ref[...] * jax.lax.rsqrt(var + _EPS)     # EUP rsqrt, gamma folded in
            shift = beta_ref[...] - mean * scale
            h = y * scale + shift                          # single fused scale/shift

        # Final Linear (no activation / no BN); store at true output width.
        w_ref, b_ref = refs[idx], refs[idx + 1]
        y = jnp.dot(h.astype(w_ref.dtype), w_ref[...],
                    preferred_element_type=jnp.float32) + b_ref[...]
        o_ref[...] = y.astype(o_ref.dtype)

    return kernel


# ------------------------------------------------------------------ one-time param prep ---
def pack_padded_params(params, bn_params, compute_dtype=jnp.bfloat16):
    """Pad params to lane-dense widths and cast weights to the matmul dtype ONCE.

    Returns (flat_args, num_hidden, out_features).
    Layout per hidden layer: w (K_pad, N_pad) compute_dtype; b/gamma/beta (1, N_pad) f32.
    Final layer: w (K_pad, out_f) compute_dtype; b (1, out_f) f32.  Padded cols are 0.
    """
    num_hidden = len(bn_params)
    args = []
    prev_pad = None  # first layer consumes the unpadded input width directly
    for lay, norm in zip(params[:-1], bn_params):
        w, b = lay["w"], lay["b"]
        k, n = w.shape
        k_pad = k if prev_pad is None else prev_pad
        n_pad = _round_up(n, _LANE)
        args.append(jnp.pad(w, ((0, k_pad - k), (0, n_pad - n))).astype(compute_dtype))
        args.append(jnp.pad(b.reshape(1, -1).astype(jnp.float32),
                            ((0, 0), (0, n_pad - n))))
        args.append(jnp.pad(norm["gamma"].reshape(1, -1).astype(jnp.float32),
                            ((0, 0), (0, n_pad - n))))
        args.append(jnp.pad(norm["beta"].reshape(1, -1).astype(jnp.float32),
                            ((0, 0), (0, n_pad - n))))
        prev_pad = n_pad

    w, b = params[-1]["w"], params[-1]["b"]
    k, out_f = w.shape
    k_pad = k if prev_pad is None else prev_pad
    args.append(jnp.pad(w, ((0, k_pad - k), (0, 0))).astype(compute_dtype))
    args.append(b.reshape(1, -1).astype(jnp.float32))
    return tuple(args), num_hidden, out_f


def make_mlp_forward(params, bn_params, compute_dtype=jnp.bfloat16):
    """Build a jitted forward whose per-call work is exactly one pallas_call."""
    flat_args, num_hidden, out_f = pack_padded_params(params, bn_params, compute_dtype)
    kernel = _make_fused_mlp_kernel(num_hidden)
    n_args = 1 + len(flat_args)

    def _forward(x, *fargs):
        batch = x.shape[0]
        return pl.pallas_call(
            kernel,
            out_shape=jax.ShapeDtypeStruct((batch, out_f), x.dtype),
            in_specs=[_VMEM] * n_args,
            out_specs=_VMEM,
        )(x, *fargs)

    forward_jit = jax.jit(_forward)
    return lambda x: forward_jit(x, *flat_args)


# ---------------------------------------------------------------------------- init/ref ---
def init_mlp_params(key, net_arch):
    """Init mirroring nn.Linear (U(+/-1/sqrt(fan_in))) and fresh BatchNorm1d."""
    params = []
    for a, b in zip(net_arch[:-1], net_arch[1:]):
        key, kw, kb = jax.random.split(key, 3)
        bound = 1.0 / (a ** 0.5)
        w = jax.random.uniform(kw, (a, b), jnp.float32, -bound, bound)   # (in, out)
        bias = jax.random.uniform(kb, (b,), jnp.float32, -bound, bound)
        params.append({"w": w, "b": bias})
    bn_params = [{"gamma": jnp.ones((b,), jnp.float32),
                  "beta": jnp.zeros((b,), jnp.float32)} for b in net_arch[1:-1]]
    return params, bn_params


def mlp_reference(x, params, bn_params):
    """Pure-JAX f32 reference matching PyTorch MLP.forward in training mode."""
    h = x
    for lay, norm in zip(params[:-1], bn_params):
        y = jnp.maximum(h @ lay["w"] + lay["b"], 0.0)
        mean = jnp.mean(y, axis=0)
        var = jnp.mean((y - mean) ** 2, axis=0)           # biased variance
        h = (y - mean) * jax.lax.rsqrt(var + _EPS) * norm["gamma"] + norm["beta"]
    return h @ params[-1]["w"] + params[-1]["b"]


# --------------------------------------------------------------------------------- main ---
if __name__ == "__main__":
    net_arch = [16, 32, 32, 8]   # input, hidden0, hidden1, out
    batch = 8

    key = jax.random.PRNGKey(0)
    key, kx = jax.random.split(key)
    x = jax.random.normal(kx, (batch, net_arch[0]), dtype=jnp.float32)

    params, bn_params = init_mlp_params(key, net_arch)

    mlp_forward = make_mlp_forward(params, bn_params)     # padding/cast happens once, here
    out = mlp_forward(x)
    jax.block_until_ready(out)

    assert out.shape == (batch, net_arch[-1])
    assert bool(jnp.all(jnp.isfinite(out)))
    ref = mlp_reference(x, params, bn_params)
    # bf16 matmul operands -> loose tolerance vs the f32 reference.
    assert bool(jnp.max(jnp.abs(out - ref)) < 5e-2)

    print("KERNEL_OK")
</pallas_src>

<mosaic_0001>
module attributes {stable_mosaic.version = 11 : i64} {
  func.func @kernel(%arg0: memref<8x16xf32, #tpu.memory_space<vmem>>, %arg1: memref<16x128xbf16, #tpu.memory_space<vmem>>, %arg2: memref<1x128xf32, #tpu.memory_space<vmem>>, %arg3: memref<1x128xf32, #tpu.memory_space<vmem>>, %arg4: memref<1x128xf32, #tpu.memory_space<vmem>>, %arg5: memref<128x128xbf16, #tpu.memory_space<vmem>>, %arg6: memref<1x128xf32, #tpu.memory_space<vmem>>, %arg7: memref<1x128xf32, #tpu.memory_space<vmem>>, %arg8: memref<1x128xf32, #tpu.memory_space<vmem>>, %arg9: memref<128x8xbf16, #tpu.memory_space<vmem>>, %arg10: memref<1x8xf32, #tpu.memory_space<vmem>>, %arg11: memref<8x8xf32, #tpu.memory_space<vmem>>) attributes {dimension_semantics = [], scalar_prefetch = 0 : i64, scratch_operands = 0 : i64, tpu.core_type = #tpu.core_type<tc>} {
    %c0 = arith.constant 0 : index
    %c0_0 = arith.constant 0 : index
    %0 = vector.load %arg0[%c0, %c0_0] : memref<8x16xf32, #tpu.memory_space<vmem>>, vector<8x16xf32>
    %1 = arith.truncf %0 : vector<8x16xf32> to vector<8x16xbf16>
    %c0_1 = arith.constant 0 : index
    %c0_2 = arith.constant 0 : index
    %2 = vector.load %arg1[%c0_1, %c0_2] : memref<16x128xbf16, #tpu.memory_space<vmem>>, vector<16x128xbf16>
    %cst = arith.constant dense<0.000000e+00> : vector<8x128xf32>
    %3 = tpu.matmul %1, %2, %cst {dimension_numbers = #tpu.dot_dimension_numbers<[1], [0], [0], [1], [0, 0, 1, 1], [], []>} : vector<8x16xbf16>, vector<16x128xbf16>, vector<8x128xf32> -> vector<8x128xf32>
    %c0_3 = arith.constant 0 : index
    %c0_4 = arith.constant 0 : index
    %4 = vector.load %arg2[%c0_3, %c0_4] : memref<1x128xf32, #tpu.memory_space<vmem>>, vector<1x128xf32>
    %5 = vector.broadcast %4 : vector<1x128xf32> to vector<8x128xf32>
    %6 = arith.addf %3, %5 : vector<8x128xf32>
    %cst_5 = arith.constant 0.000000e+00 : f32
    %7 = vector.broadcast %cst_5 : f32 to vector<8x128xf32>
    %8 = arith.maximumf %6, %7 : vector<8x128xf32>
    %cst_6 = arith.constant dense<0.000000e+00> : vector<128xf32>
    %9 = vector.multi_reduction <add>, %8, %cst_6 [0] : vector<8x128xf32> to vector<128xf32>
    %10 = vector.shape_cast %9 : vector<128xf32> to vector<1x128xf32>
    %11 = arith.mulf %8, %8 : vector<8x128xf32>
    %cst_7 = arith.constant dense<0.000000e+00> : vector<128xf32>
    %12 = vector.multi_reduction <add>, %11, %cst_7 [0] : vector<8x128xf32> to vector<128xf32>
    %13 = vector.shape_cast %12 : vector<128xf32> to vector<1x128xf32>
    %cst_8 = arith.constant 1.250000e-01 : f32
    %14 = vector.broadcast %cst_8 : f32 to vector<1x128xf32>
    %15 = arith.mulf %10, %14 : vector<1x128xf32>
    %cst_9 = arith.constant 1.250000e-01 : f32
    %16 = vector.broadcast %cst_9 : f32 to vector<1x128xf32>
    %17 = arith.mulf %13, %16 : vector<1x128xf32>
    %18 = arith.mulf %15, %15 : vector<1x128xf32>
    %19 = arith.subf %17, %18 : vector<1x128xf32>
    %cst_10 = arith.constant 0.000000e+00 : f32
    %20 = vector.broadcast %cst_10 : f32 to vector<1x128xf32>
    %21 = arith.maximumf %19, %20 : vector<1x128xf32>
    %c0_11 = arith.constant 0 : index
    %c0_12 = arith.constant 0 : index
    %22 = vector.load %arg3[%c0_11, %c0_12] : memref<1x128xf32, #tpu.memory_space<vmem>>, vector<1x128xf32>
    %cst_13 = arith.constant 9.99999974E-6 : f32
    %23 = vector.broadcast %cst_13 : f32 to vector<1x128xf32>
    %24 = arith.addf %21, %23 : vector<1x128xf32>
    %25 = math.rsqrt %24 : vector<1x128xf32>
    %26 = arith.mulf %22, %25 : vector<1x128xf32>
    %c0_14 = arith.constant 0 : index
    %c0_15 = arith.constant 0 : index
    %27 = vector.load %arg4[%c0_14, %c0_15] : memref<1x128xf32, #tpu.memory_space<vmem>>, vector<1x128xf32>
    %28 = arith.mulf %15, %26 : vector<1x128xf32>
    %29 = arith.subf %27, %28 : vector<1x128xf32>
    %30 = vector.broadcast %26 : vector<1x128xf32> to vector<8x128xf32>
    %31 = arith.mulf %8, %30 : vector<8x128xf32>
    %32 = vector.broadcast %29 : vector<1x128xf32> to vector<8x128xf32>
    %33 = arith.addf %31, %32 : vector<8x128xf32>
    %34 = arith.truncf %33 : vector<8x128xf32> to vector<8x128xbf16>
    %c0_16 = arith.constant 0 : index
    %c0_17 = arith.constant 0 : index
    %35 = vector.load %arg5[%c0_16, %c0_17] : memref<128x128xbf16, #tpu.memory_space<vmem>>, vector<128x128xbf16>
    %cst_18 = arith.constant dense<0.000000e+00> : vector<8x128xf32>
    %36 = tpu.matmul %34, %35, %cst_18 {dimension_numbers = #tpu.dot_dimension_numbers<[1], [0], [0], [1], [0, 0, 1, 1], [], []>} : vector<8x128xbf16>, vector<128x128xbf16>, vector<8x128xf32> -> vector<8x128xf32>
    %c0_19 = arith.constant 0 : index
    %c0_20 = arith.constant 0 : index
    %37 = vector.load %arg6[%c0_19, %c0_20] : memref<1x128xf32, #tpu.memory_space<vmem>>, vector<1x128xf32>
    %38 = vector.broadcast %37 : vector<1x128xf32> to vector<8x128xf32>
    %39 = arith.addf %36, %38 : vector<8x128xf32>
    %cst_21 = arith.constant 0.000000e+00 : f32
    %40 = vector.broadcast %cst_21 : f32 to vector<8x128xf32>
    %41 = arith.maximumf %39, %40 : vector<8x128xf32>
    %cst_22 = arith.constant dense<0.000000e+00> : vector<128xf32>
    %42 = vector.multi_reduction <add>, %41, %cst_22 [0] : vector<8x128xf32> to vector<128xf32>
    %43 = vector.shape_cast %42 : vector<128xf32> to vector<1x128xf32>
    %44 = arith.mulf %41, %41 : vector<8x128xf32>
    %cst_23 = arith.constant dense<0.000000e+00> : vector<128xf32>
    %45 = vector.multi_reduction <add>, %44, %cst_23 [0] : vector<8x128xf32> to vector<128xf32>
    %46 = vector.shape_cast %45 : vector<128xf32> to vector<1x128xf32>
    %cst_24 = arith.constant 1.250000e-01 : f32
    %47 = vector.broadcast %cst_24 : f32 to vector<1x128xf32>
    %48 = arith.mulf %43, %47 : vector<1x128xf32>
    %cst_25 = arith.constant 1.250000e-01 : f32
    %49 = vector.broadcast %cst_25 : f32 to vector<1x128xf32>
    %50 = arith.mulf %46, %49 : vector<1x128xf32>
    %51 = arith.mulf %48, %48 : vector<1x128xf32>
    %52 = arith.subf %50, %51 : vector<1x128xf32>
    %cst_26 = arith.constant 0.000000e+00 : f32
    %53 = vector.broadcast %cst_26 : f32 to vector<1x128xf32>
    %54 = arith.maximumf %52, %53 : vector<1x128xf32>
    %c0_27 = arith.constant 0 : index
    %c0_28 = arith.constant 0 : index
    %55 = vector.load %arg7[%c0_27, %c0_28] : memref<1x128xf32, #tpu.memory_space<vmem>>, vector<1x128xf32>
    %cst_29 = arith.constant 9.99999974E-6 : f32
    %56 = vector.broadcast %cst_29 : f32 to vector<1x128xf32>
    %57 = arith.addf %54, %56 : vector<1x128xf32>
    %58 = math.rsqrt %57 : vector<1x128xf32>
    %59 = arith.mulf %55, %58 : vector<1x128xf32>
    %c0_30 = arith.constant 0 : index
    %c0_31 = arith.constant 0 : index
    %60 = vector.load %arg8[%c0_30, %c0_31] : memref<1x128xf32, #tpu.memory_space<vmem>>, vector<1x128xf32>
    %61 = arith.mulf %48, %59 : vector<1x128xf32>
    %62 = arith.subf %60, %61 : vector<1x128xf32>
    %63 = vector.broadcast %59 : vector<1x128xf32> to vector<8x128xf32>
    %64 = arith.mulf %41, %63 : vector<8x128xf32>
    %65 = vector.broadcast %62 : vector<1x128xf32> to vector<8x128xf32>
    %66 = arith.addf %64, %65 : vector<8x128xf32>
    %67 = arith.truncf %66 : vector<8x128xf32> to vector<8x128xbf16>
    %c0_32 = arith.constant 0 : index
    %c0_33 = arith.constant 0 : index
    %68 = vector.load %arg9[%c0_32, %c0_33] : memref<128x8xbf16, #tpu.memory_space<vmem>>, vector<128x8xbf16>
    %cst_34 = arith.constant dense<0.000000e+00> : vector<8x8xf32>
    %69 = tpu.matmul %67, %68, %cst_34 {dimension_numbers = #tpu.dot_dimension_numbers<[1], [0], [0], [1], [0, 0, 1, 1], [], []>} : vector<8x128xbf16>, vector<128x8xbf16>, vector<8x8xf32> -> vector<8x8xf32>
    %c0_35 = arith.constant 0 : index
    %c0_36 = arith.constant 0 : index
    %70 = vector.load %arg10[%c0_35, %c0_36] : memref<1x8xf32, #tpu.memory_space<vmem>>, vector<1x8xf32>
    %71 = vector.broadcast %70 : vector<1x8xf32> to vector<8x8xf32>
    %72 = arith.addf %69, %71 : vector<8x8xf32>
    %c0_37 = arith.constant 0 : index
    %c0_38 = arith.constant 0 : index
    %73 = vector.load %arg11[%c0_37, %c0_38] : memref<8x8xf32, #tpu.memory_space<vmem>>, vector<8x8xf32>
    tpu.vector_store %arg11[%c0_37, %c0_38], %72 {strides = array<i32>} : memref<8x8xf32, #tpu.memory_space<vmem>>, vector<8x8xf32>,
    return
  }
}

</mosaic_0001>

<llo_original>
// kernel: _forward.1
$region0: #{_forward.1}
  #allocation0 [shape = 'u32[]', space=smem, size = 0x4, offset = 0x4, fixed_abs, tag = 'smem constant byte address 0x4 - core index']
  #allocation1 [shape = 'u32[144,128]{1,0:T(1,128)}', space=vmem, size = 0x12000, scoped, tag = 'internal scratch']
  %s0 = inlined_call_operand.vmem [shape: f32[8,16], index: 0, kind: input, shape index: {}]
  %s1 = inlined_call_operand.vmem [shape: bf16[16,128], index: 1, kind: input, shape index: {}]
  %s2 = inlined_call_operand.vmem [shape: f32[1,128], index: 2, kind: input, shape index: {}]
  %s3 = inlined_call_operand.vmem [shape: f32[1,128], index: 3, kind: input, shape index: {}]
  %s4 = inlined_call_operand.vmem [shape: f32[1,128], index: 4, kind: input, shape index: {}]
  %s5 = inlined_call_operand.vmem [shape: bf16[128,128], index: 5, kind: input, shape index: {}]
  %s6 = inlined_call_operand.vmem [shape: f32[1,128], index: 6, kind: input, shape index: {}]
  %s7 = inlined_call_operand.vmem [shape: f32[1,128], index: 7, kind: input, shape index: {}]
  %s8 = inlined_call_operand.vmem [shape: f32[1,128], index: 8, kind: input, shape index: {}]
  %s9 = inlined_call_operand.vmem [shape: bf16[128,8], index: 9, kind: input, shape index: {}]
  %s10 = inlined_call_operand.vmem [shape: f32[1,8], index: 10, kind: input, shape index: {}]
  %s11 = inlined_call_operand.hbm [shape: f32[8,8], index: 11, kind: output, shape index: {}]
  %s12 = sld [smem:[#allocation0]]
  $region54: #{_forward.1} parent=0
    _
  %s14 = ssub.s32 1, %s12
  %s15 = scalar_select 0, %s14, %s12
  $region1: #{_forward.1} parent=0
    #allocation2 [shape = 'u8[4096]{0}', space=vmem, size = 0x1000, scoped, tag = 'output window, operand 0, single buffered']
    #allocation3 [shape = 's32[1]{0}', space=sflag, size = 0x4, scoped, tag = 'scoped memory for _forward.1']
    %16 = vsyncpa [#allocation3], 0
    // Predicated region
    $region2: #{_forward.1} parent=1 // pred_check
      _
    $region3: #{_forward.1} parent=1 // pred_check_branch
      %18 = sbr.rel (0) target = $region5
    $region4: #{_forward.1} parent=1 // pred_region
      _
    $region5: #{_forward.1} parent=1 // pred_fallthru
      _
    // Predicated region
    $region6: #{_forward.1} parent=1 // pred_check
      _
    $region7: #{_forward.1} parent=1 // pred_check_branch
      %20 = sbr.rel (0) target = $region9
    $region8: #{_forward.1} parent=1 // pred_region
      _
    $region9: #{_forward.1} parent=1 // pred_fallthru
      _
    // Predicated region
    $region10: #{_forward.1} parent=1 // pred_check
      _
    $region11: #{_forward.1} parent=1 // pred_check_branch
      %22 = sbr.rel (0) target = $region13
    $region12: #{_forward.1} parent=1 // pred_region
      _
    $region13: #{_forward.1} parent=1 // pred_fallthru
      _
    // Predicated region
    $region14: #{_forward.1} parent=1 // pred_check
      _
    $region15: #{_forward.1} parent=1 // pred_check_branch
      %24 = sbr.rel (0) target = $region17
    $region16: #{_forward.1} parent=1 // pred_region
      _
    $region17: #{_forward.1} parent=1 // pred_fallthru
      _
    // Predicated region
    $region18: #{_forward.1} parent=1 // pred_check
      _
    $region19: #{_forward.1} parent=1 // pred_check_branch
      %26 = sbr.rel (0) target = $region21
    $region20: #{_forward.1} parent=1 // pred_region
      _
    $region21: #{_forward.1} parent=1 // pred_fallthru
      _
    // Predicated region
    $region22: #{_forward.1} parent=1 // pred_check
      _
    $region23: #{_forward.1} parent=1 // pred_check_branch
      %28 = sbr.rel (0) target = $region25
    $region24: #{_forward.1} parent=1 // pred_region
      _
    $region25: #{_forward.1} parent=1 // pred_fallthru
      _
    // Predicated region
    $region26: #{_forward.1} parent=1 // pred_check
      _
    $region27: #{_forward.1} parent=1 // pred_check_branch
      %30 = sbr.rel (0) target = $region29
    $region28: #{_forward.1} parent=1 // pred_region
      _
    $region29: #{_forward.1} parent=1 // pred_fallthru
      _
    // Predicated region
    $region30: #{_forward.1} parent=1 // pred_check
      _
    $region31: #{_forward.1} parent=1 // pred_check_branch
      %32 = sbr.rel (0) target = $region33
    $region32: #{_forward.1} parent=1 // pred_region
      _
    $region33: #{_forward.1} parent=1 // pred_fallthru
      _
    // Predicated region
    $region34: #{_forward.1} parent=1 // pred_check
      _
    $region35: #{_forward.1} parent=1 // pred_check_branch
      %34 = sbr.rel (0) target = $region37
    $region36: #{_forward.1} parent=1 // pred_region
      _
    $region37: #{_forward.1} parent=1 // pred_fallthru
      _
    // Predicated region
    $region38: #{_forward.1} parent=1 // pred_check
      _
    $region39: #{_forward.1} parent=1 // pred_check_branch
      %36 = sbr.rel (0) target = $region41
    $region40: #{_forward.1} parent=1 // pred_region
      _
    $region41: #{_forward.1} parent=1 // pred_fallthru
      _
    // Predicated region
    $region42: #{_forward.1} parent=1 // pred_check
      _
    $region43: #{_forward.1} parent=1 // pred_check_branch
      %38 = sbr.rel (0) target = $region45
    $region44: #{_forward.1} parent=1 // pred_region
      _
    $region45: #{_forward.1} parent=1 // pred_fallthru
      _
    %v40 = vld [vmem:[%s0] sm:$0xff]
    %v41 = vpack.c.bf16 %v40, %v40
    %v42 = vld [vmem:[%s1] sm:$0xf]
    %v43 = vld [vmem:[%s1 + $0x4] sm:$0xf]
    %v44 = vld [vmem:[%s2] sm:$0x1]
    %v46 = vlaneseq
    %v47 = vshrl.u32 %v46, 7
    %v48 = vsub.s32 0, %v47
    %v49 = vrot.slane %v44, %v48
    %v53 = vunpack.c.l.b16 %v42
    %v54 = vunpack.c.l.b16 %v43
    %v55 = vpack.c.b16 %v54, %v53
    %vm57 = vcmask 130048
    %v59 = vsel %vm57, %v41, 0
    %61 = vmatprep.subr.bf16.mxu0 0
    %62 = vmatpush1.bf16.msra.mxu0 %v55
    %63 = vmatprep.subr.bf16.mxu0 0
    %64 = vmatpush1.bf16.msra.mxu0 0
    %65 = vmatprep.subr.bf16.mxu0 0
    %66 = vmatpush1.bf16.msra.mxu0 0
    %67 = vmatprep.subr.bf16.mxu0 0
    %68 = vmatpush1.bf16.msra.mxu0 0
    %69 = vmatprep.subr.bf16.mxu0 0
    %70 = vmatpush1.bf16.msra.mxu0 0
    %71 = vmatprep.subr.bf16.mxu0 0
    %72 = vmatpush1.bf16.msra.mxu0 0
    %73 = vmatprep.subr.bf16.mxu0 0
    %74 = vmatpush1.bf16.msra.mxu0 0
    %75 = vmatprep.subr.bf16.mxu0 0
    %76 = vmatpush1.bf16.msra.mxu0 0
    %77 = vmatprep.subr.bf16.mxu0 0
    %78 = vmatpush1.bf16.msra.mxu0 0
    %79 = vmatprep.subr.bf16.mxu0 0
    %80 = vmatpush1.bf16.msra.mxu0 0
    %81 = vmatprep.subr.bf16.mxu0 0
    %82 = vmatpush1.bf16.msra.mxu0 0
    %83 = vmatprep.subr.bf16.mxu0 0
    %84 = vmatpush1.bf16.msra.mxu0 0
    %85 = vmatprep.subr.bf16.mxu0 0
    %86 = vmatpush1.bf16.msra.mxu0 0
    %87 = vmatprep.subr.bf16.mxu0 0
    %88 = vmatpush1.bf16.msra.mxu0 0
    %89 = vmatprep.subr.bf16.mxu0 0
    %90 = vmatpush1.bf16.msra.mxu0 0
    %91 = vmatprep.subr.bf16.mxu0 0
    %92 = vmatpush1.bf16.msra.mxu0 0
    %93 = vmatprep.mubr.bf16.mxu0 0
    %94 = vmatmul.mubr.bf16.gmra.mrb[0].mxu0 %v59
    %v95 = vpop.f32.mrb[0].mxu0
    %v96 = vadd.f32 %v49, %v95
    %v97 = vpop.f32.mrb[0].mxu0
    %v98 = vpop.f32.mrb[0].mxu0
    %v99 = vpop.f32.mrb[0].mxu0
    %100 = vdwg.mxu0
    %v101 = vmax.f32 %v96, 0.0
    %v102 = vrot.slane %v101, 4
    %v103 = vadd.f32 %v101, %v102
    %v104 = vrot.slane %v103, 2
    %v105 = vadd.f32 %v103, %v104
    %v106 = vrot.slane %v105, 1
    %v107 = vadd.f32 %v105, %v106
    %v108 = vmul.f32 %v101, %v101
    %v109 = vrot.slane %v108, 4
    %v110 = vadd.f32 %v108, %v109
    %v111 = vrot.slane %v110, 2
    %v112 = vadd.f32 %v110, %v111
    %v113 = vrot.slane %v112, 1
    %v114 = vadd.f32 %v112, %v113
    %v115 = vmul.f32 %v107, 0.125
    %v116 = vmul.f32 %v114, 0.125
    %v117 = vmul.f32 %v115, %v115
    %v118 = vsub.f32 %v116, %v117
    %v119 = vmax.f32 %v118, 0.0
    %v120 = vld [vmem:[%s3] sm:$0x1]
    %v121 = vadd.f32 %v119, 1e-05
    %v122 = vrsqrt.pop %v121
    %v123 = vmul.f32 %v120, %v122
    %v124 = vld [vmem:[%s4] sm:$0x1]
    %v125 = vmul.f32 %v115, %v123
    %v126 = vsub.f32 %v124, %v125
    %v128 = vlaneseq
    %v129 = vshrl.u32 %v128, 7
    %v130 = vsub.s32 0, %v129
    %v131 = vrot.slane %v123, %v130
    %v133 = vmul.f32 %v101, %v131
    %v135 = vlaneseq
    %v136 = vshrl.u32 %v135, 7
    %v137 = vsub.s32 0, %v136
    %v138 = vrot.slane %v126, %v137
    %v140 = vadd.f32 %v133, %v138
    %v141 = vpack.c.bf16 %v140, %v140
    %v142 = vld [vmem:[%s5] sm:$0xf]
    %v143 = vld [vmem:[%s5 + $0x4] sm:$0xf]
    %v144 = vld [vmem:[%s5 + $0x8] sm:$0xf]
    %v145 = vld [vmem:[%s5 + $0xc] sm:$0xf]
    %v146 = vld [vmem:[%s5 + $0x10] sm:$0xf]
    %v147 = vld [vmem:[%s5 + $0x14] sm:$0xf]
    %v148 = vld [vmem:[%s5 + $0x18] sm:$0xf]
    %v149 = vld [vmem:[%s5 + $0x1c] sm:$0xf]
    %v150 = vld [vmem:[%s5 + $0x20] sm:$0xf]
    %v151 = vld [vmem:[%s5 + $0x24] sm:$0xf]
    %v152 = vld [vmem:[%s5 + $0x28] sm:$0xf]
    %v153 = vld [vmem:[%s5 + $0x2c] sm:$0xf]
    %v154 = vld [vmem:[%s5 + $0x30] sm:$0xf]
    %v155 = vld [vmem:[%s5 + $0x34] sm:$0xf]
    %v156 = vld [vmem:[%s5 + $0x38] sm:$0xf]
    %v157 = vld [vmem:[%s5 + $0x3c] sm:$0xf]
    %v158 = vld [vmem:[%s6] sm:$0x1]
    %v160 = vlaneseq
    %v161 = vshrl.u32 %v160, 7
    %v162 = vsub.s32 0, %v161
    %v163 = vrot.slane %v158, %v162
    %v181 = vunpack.c.l.b16 %v142
    %v182 = vunpack.c.l.b16 %v143
    %v183 = vunpack.c.l.b16 %v144
    %v184 = vunpack.c.l.b16 %v145
    %v185 = vunpack.c.l.b16 %v146
    %v186 = vunpack.c.l.b16 %v147
    %v187 = vunpack.c.l.b16 %v148
    %v188 = vunpack.c.l.b16 %v149
    %v189 = vunpack.c.l.b16 %v150
    %v190 = vunpack.c.l.b16 %v151
    %v191 = vunpack.c.l.b16 %v152
    %v192 = vunpack.c.l.b16 %v153
    %v193 = vunpack.c.l.b16 %v154
    %v194 = vunpack.c.l.b16 %v155
    %v195 = vunpack.c.l.b16 %v156
    %v196 = vunpack.c.l.b16 %v157
    %v197 = vpack.c.b16 %v182, %v181
    %v198 = vpack.c.b16 %v184, %v183
    %v199 = vpack.c.b16 %v186, %v185
    %v200 = vpack.c.b16 %v188, %v187
    %v201 = vpack.c.b16 %v190, %v189
    %v202 = vpack.c.b16 %v192, %v191
    %v203 = vpack.c.b16 %v194, %v193
    %v204 = vpack.c.b16 %v196, %v195
    %213 = vmatprep.subr.bf16.mxu0 0
    %214 = vmatpush1.bf16.msra.mxu0 %v197
    %215 = vmatprep.subr.bf16.mxu0 0
    %216 = vmatpush1.bf16.msra.mxu0 %v198
    %217 = vmatprep.subr.bf16.mxu0 0
    %218 = vmatpush1.bf16.msra.mxu0 %v199
    %219 = vmatprep.subr.bf16.mxu0 0
    %220 = vmatpush1.bf16.msra.mxu0 %v200
    %221 = vmatprep.subr.bf16.mxu0 0
    %222 = vmatpush1.bf16.msra.mxu0 %v201
    %223 = vmatprep.subr.bf16.mxu0 0
    %224 = vmatpush1.bf16.msra.mxu0 %v202
    %225 = vmatprep.subr.bf16.mxu0 0
    %226 = vmatpush1.bf16.msra.mxu0 %v203
    %227 = vmatprep.subr.bf16.mxu0 0
    %228 = vmatpush1.bf16.msra.mxu0 %v204
    %229 = vmatprep.subr.bf16.mxu0 0
    %230 = vmatpush1.bf16.msra.mxu0 0
    %231 = vmatprep.subr.bf16.mxu0 0
    %232 = vmatpush1.bf16.msra.mxu0 0
    %233 = vmatprep.subr.bf16.mxu0 0
    %234 = vmatpush1.bf16.msra.mxu0 0
    %235 = vmatprep.subr.bf16.mxu0 0
    %236 = vmatpush1.bf16.msra.mxu0 0
    %237 = vmatprep.subr.bf16.mxu0 0
    %238 = vmatpush1.bf16.msra.mxu0 0
    %239 = vmatprep.subr.bf16.mxu0 0
    %240 = vmatpush1.bf16.msra.mxu0 0
    %241 = vmatprep.subr.bf16.mxu0 0
    %242 = vmatpush1.bf16.msra.mxu0 0
    %243 = vmatprep.subr.bf16.mxu0 0
    %244 = vmatpush1.bf16.msra.mxu0 0
    %245 = vmatprep.mubr.bf16.mxu0 0
    %246 = vmatmul.mubr.bf16.gmra.mrb[0].mxu0 %v141
    %v247 = vpop.f32.mrb[0].mxu0
    %v248 = vadd.f32 %v163, %v247
    %v249 = vpop.f32.mrb[0].mxu0
    %v250 = vpop.f32.mrb[0].mxu0
    %v251 = vpop.f32.mrb[0].mxu0
    %252 = vdwg.mxu0
    %v253 = vmax.f32 %v248, 0.0
    %v254 = vrot.slane %v253, 4
    %v255 = vadd.f32 %v253, %v254
    %v256 = vrot.slane %v255, 2
    %v257 = vadd.f32 %v255, %v256
    %v258 = vrot.slane %v257, 1
    %v259 = vadd.f32 %v257, %v258
    %v260 = vmul.f32 %v253, %v253
    %v261 = vrot.slane %v260, 4
    %v262 = vadd.f32 %v260, %v261
    %v263 = vrot.slane %v262, 2
    %v264 = vadd.f32 %v262, %v263
    %v265 = vrot.slane %v264, 1
    %v266 = vadd.f32 %v264, %v265
    %v267 = vmul.f32 %v259, 0.125
    %v268 = vmul.f32 %v266, 0.125
    %v269 = vmul.f32 %v267, %v267
    %v270 = vsub.f32 %v268, %v269
    %v271 = vmax.f32 %v270, 0.0
    %v272 = vld [vmem:[%s7] sm:$0x1]
    %v273 = vadd.f32 %v271, 1e-05
    %v274 = vrsqrt.pop %v273
    %v275 = vmul.f32 %v272, %v274
    %v276 = vld [vmem:[%s8] sm:$0x1]
    %v277 = vmul.f32 %v267, %v275
    %v278 = vsub.f32 %v276, %v277
    %v280 = vlaneseq
    %v281 = vshrl.u32 %v280, 7
    %v282 = vsub.s32 0, %v281
    %v283 = vrot.slane %v275, %v282
    %v285 = vmul.f32 %v253, %v283
    %v287 = vlaneseq
    %v288 = vshrl.u32 %v287, 7
    %v289 = vsub.s32 0, %v288
    %v290 = vrot.slane %v278, %v289
    %v292 = vadd.f32 %v285, %v290
    %v293 = vpack.c.bf16 %v292, %v292
    %v294 = vld [vmem:[%s9] sm:$0xf]
    %v295 = vld [vmem:[%s9 + $0x4] sm:$0xf]
    %v296 = vld [vmem:[%s9 + $0x8] sm:$0xf]
    %v297 = vld [vmem:[%s9 + $0xc] sm:$0xf]
    %v298 = vld [vmem:[%s9 + $0x10] sm:$0xf]
    %v299 = vld [vmem:[%s9 + $0x14] sm:$0xf]
    %v300 = vld [vmem:[%s9 + $0x18] sm:$0xf]
    %v301 = vld [vmem:[%s9 + $0x1c] sm:$0xf]
    %v302 = vld [vmem:[%s9 + $0x20] sm:$0xf]
    %v303 = vld [vmem:[%s9 + $0x24] sm:$0xf]
    %v304 = vld [vmem:[%s9 + $0x28] sm:$0xf]
    %v305 = vld [vmem:[%s9 + $0x2c] sm:$0xf]
    %v306 = vld [vmem:[%s9 + $0x30] sm:$0xf]
    %v307 = vld [vmem:[%s9 + $0x34] sm:$0xf]
    %v308 = vld [vmem:[%s9 + $0x38] sm:$0xf]
    %v309 = vld [vmem:[%s9 + $0x3c] sm:$0xf]
    %v310 = vld [vmem:[%s10] sm:$0x1]
    %v312 = vlaneseq
    %v313 = vshrl.u32 %v312, 7
    %v314 = vsub.s32 0, %v313
    %v315 = vrot.slane %v310, %v314
    %v333 = vunpack.c.l.b16 %v294
    %v334 = vunpack.c.l.b16 %v295
    %v335 = vunpack.c.l.b16 %v296
    %v336 = vunpack.c.l.b16 %v297
    %v337 = vunpack.c.l.b16 %v298
    %v338 = vunpack.c.l.b16 %v299
    %v339 = vunpack.c.l.b16 %v300
    %v340 = vunpack.c.l.b16 %v301
    %v341 = vunpack.c.l.b16 %v302
    %v342 = vunpack.c.l.b16 %v303
    %v343 = vunpack.c.l.b16 %v304
    %v344 = vunpack.c.l.b16 %v305
    %v345 = vunpack.c.l.b16 %v306
    %v346 = vunpack.c.l.b16 %v307
    %v347 = vunpack.c.l.b16 %v308
    %v348 = vunpack.c.l.b16 %v309
    %v349 = vpack.c.b16 %v334, %v333
    %v350 = vpack.c.b16 %v336, %v335
    %v351 = vpack.c.b16 %v338, %v337
    %v352 = vpack.c.b16 %v340, %v339
    %v353 = vpack.c.b16 %v342, %v341
    %v354 = vpack.c.b16 %v344, %v343
    %v355 = vpack.c.b16 %v346, %v345
    %v356 = vpack.c.b16 %v348, %v347
    %365 = vmatprep.subr.bf16.mxu0 0
    %366 = vmatpush1.bf16.msra.mxu0 %v349
    %367 = vmatprep.subr.bf16.mxu0 0
    %368 = vmatpush1.bf16.msra.mxu0 %v350
    %369 = vmatprep.subr.bf16.mxu0 0
    %370 = vmatpush1.bf16.msra.mxu0 %v351
    %371 = vmatprep.subr.bf16.mxu0 0
    %372 = vmatpush1.bf16.msra.mxu0 %v352
    %373 = vmatprep.subr.bf16.mxu0 0
    %374 = vmatpush1.bf16.msra.mxu0 %v353
    %375 = vmatprep.subr.bf16.mxu0 0
    %376 = vmatpush1.bf16.msra.mxu0 %v354
    %377 = vmatprep.subr.bf16.mxu0 0
    %378 = vmatpush1.bf16.msra.mxu0 %v355
    %379 = vmatprep.subr.bf16.mxu0 0
    %380 = vmatpush1.bf16.msra.mxu0 %v356
    %381 = vmatprep.subr.bf16.mxu0 0
    %382 = vmatpush1.bf16.msra.mxu0 0
    %383 = vmatprep.subr.bf16.mxu0 0
    %384 = vmatpush1.bf16.msra.mxu0 0
    %385 = vmatprep.subr.bf16.mxu0 0
    %386 = vmatpush1.bf16.msra.mxu0 0
    %387 = vmatprep.subr.bf16.mxu0 0
    %388 = vmatpush1.bf16.msra.mxu0 0
    %389 = vmatprep.subr.bf16.mxu0 0
    %390 = vmatpush1.bf16.msra.mxu0 0
    %391 = vmatprep.subr.bf16.mxu0 0
    %392 = vmatpush1.bf16.msra.mxu0 0
    %393 = vmatprep.subr.bf16.mxu0 0
    %394 = vmatpush1.bf16.msra.mxu0 0
    %395 = vmatprep.subr.bf16.mxu0 0
    %396 = vmatpush1.bf16.msra.mxu0 0
    %397 = vmatprep.mubr.bf16.mxu0 0
    %398 = vmatmul.mubr.bf16.gmra.mrb[0].mxu0 %v293
    %v399 = vpop.f32.mrb[0].mxu0
    %v400 = vadd.f32 %v315, %v399
    %v401 = vpop.f32.mrb[0].mxu0
    %v402 = vpop.f32.mrb[0].mxu0
    %v403 = vpop.f32.mrb[0].mxu0
    %404 = vdwg.mxu0
    %vm405 = vcmask 64512
    %406 = vst.msk [vmem:[#allocation2] sm:$0xff] %vm405, %v400
    // Predicated region
    $region46: #{_forward.1} parent=1 // pred_check
      _
    $region47: #{_forward.1} parent=1 // pred_check_branch
      %408 = sbr.rel (0) target = $region49
    $region48: #{_forward.1} parent=1 // pred_region
      %s410 = ssub.s32 128, 128
      %411 = vsyncadd [#allocation3], %s410
      %s413 = sshll.u32 [#allocation2], 4
      %s414 = int_to_ptr.vmem [resolvable:$true] %s413
      %416 = dma.vmem_to_hbm [thread:$0]  %s414, 128, %s11, [#allocation3]
    $region49: #{_forward.1} parent=1 // pred_fallthru
      _
    // Predicated region
    $region50: #{_forward.1} parent=1 // pred_check
      _
    $region51: #{_forward.1} parent=1 // pred_check_branch
      %418 = sbr.rel (0) target = $region53
    $region52: #{_forward.1} parent=1 // pred_region
      %419 = dma.done [#allocation3], 128
    $region53: #{_forward.1} parent=1 // pred_fallthru
      _
    %420 = vsyncpa [#allocation3], 1

</llo_original>
